<compile_context>
chip_gen: v6e
topology: v6e:2x2x1
jax: 0.10.0
libtpu: 0.0.40
codegen_flags: <defaults>
</compile_context>

<pallas_src>
import jax
import jax.numpy as jnp
from jax.experimental import pallas as pl
from jax.experimental.pallas import tpu as pltpu

LANE = 128
SUBLANE_F32 = 8
SUBLANE_BF16 = 16


def _round_up(x, m):
    return ((x + m - 1) // m) * m


def _layer_dims(params):
    """Per-layer (fin, fout, fin_padded, fout_padded)."""
    return [(w.shape[0], w.shape[1],
             _round_up(w.shape[0], LANE), _round_up(w.shape[1], LANE))
            for w, _ in params]


def _fold_flags(params):
    """fold[l]: layer l's bias can be baked into the padded weight because the
    layer's input activation carries a constant 1 at column index fin."""
    flags = []
    fin0 = params[0][0].shape[0]
    prev_ones_col = fin0 if _round_up(fin0, LANE) > fin0 else None
    for w, _ in params:
        fin, fout = w.shape
        flags.append(prev_ones_col == fin)
        prev_ones_col = fout if _round_up(fout, LANE) > fout else None
    return flags


def _make_prenet_kernel(num_layers, fold, fout_padded, has_bias_input, compute_dtype):
    """Fused kernel: x -> [Linear -> ReLU] * num_layers.

    Ref order: (x, w0, ..., w_{L-1}, [bias_stack], out).
    Weights are bf16 (bias rows folded in where possible); accumulation is f32.
    """

    def kernel(*refs):
        x_ref = refs[0]
        w_refs = refs[1:1 + num_layers]
        b_ref = refs[1 + num_layers] if has_bias_input else None
        o_ref = refs[-1]

        h = x_ref[...].astype(compute_dtype)          # in-kernel cast (VPU filler)
        if has_bias_input:
            b_all = b_ref[...]                        # (L, Nmax) f32, resident
        for l in range(num_layers):                   # static unroll
            w = w_refs[l][...]                        # (Kp, Np) resident bf16
            y = jnp.dot(h, w, preferred_element_type=jnp.float32)   # MXU, f32 acc
            if not fold[l]:
                y = y + b_all[l:l + 1, :fout_padded[l]]
            h = jnp.maximum(y, 0.0)                   # ReLU epilogue
            if l < num_layers - 1:
                h = h.astype(compute_dtype)           # bf16 inter-layer activation
        o_ref[...] = h.astype(o_ref.dtype)

    return kernel


def prenet_forward(inputs, params, *, compute_dtype=jnp.bfloat16, row_tile=512):
    """inputs: (batch, seq, input_size) -> (batch, seq, hidden_size).

    params: list of (w, b) with w: (fin, fout), b: (fout,), f32.
    """
    B, T, F = inputs.shape
    num_layers = len(params)
    H = params[-1][0].shape[1]

    dims = _layer_dims(params)
    fold = _fold_flags(params)
    Fp = dims[0][2]
    Hp = dims[-1][3]
    Nmax = max(d[3] for d in dims)

    # ---- row tiling: multiple of 16 for bf16 packing; prefer >= 2 grid steps (v7x 2 TCs)
    M = B * T
    row_align = SUBLANE_BF16 if compute_dtype == jnp.bfloat16 else SUBLANE_F32
    tm = min(_round_up(row_tile, row_align),
             _round_up(max(-(-M // 2), 1), row_align))
    tm = max(tm, row_align)
    Mp = _round_up(M, tm)
    grid = (Mp // tm,)

    # ---- weights / biases, lane padded; bias folded into the MXU when slack exists
    weights = []
    bias_rows = []
    for l, ((w, b), (fin, fout, finp, foutp)) in enumerate(zip(params, dims)):
        wp = jnp.zeros((finp, foutp), compute_dtype)
        wp = wp.at[:fin, :fout].set(w.astype(compute_dtype))
        brow = jnp.zeros((Nmax,), jnp.float32)
        if fold[l]:
            wp = wp.at[fin, :fout].set(b.astype(compute_dtype))   # bias row hit by the 1-column
        else:
            brow = brow.at[:fout].set(b.astype(jnp.float32))
        if l < num_layers - 1 and foutp > fout:                   # carry the 1 into next layer
            if fold[l]:
                wp = wp.at[fin, fout].set(1.0)                    # one-hot column via MXU
            else:
                brow = brow.at[fout].set(1.0)                     # ReLU(0 + 1) = 1
        weights.append(wp)
        bias_rows.append(brow)
    need_bias = not all(fold)

    # ---- input: pad+cast in the wrapper only when padding is unavoidable;
    #      otherwise stream raw f32 rows and cast inside the kernel.
    x2d = inputs.reshape(M, F)
    pad_x = (Fp != F) or (Mp != M)
    if pad_x:
        x2d = x2d.astype(compute_dtype)
        cols = [x2d]
        if Fp > F:
            cols.append(jnp.ones((M, 1), compute_dtype))          # constant-1 column for folded bias
            if Fp > F + 1:
                cols.append(jnp.zeros((M, Fp - F - 1), compute_dtype))
        x2d = jnp.concatenate(cols, axis=1)
        if Mp > M:
            x2d = jnp.concatenate([x2d, jnp.zeros((Mp - M, Fp), compute_dtype)], axis=0)

    operands = [x2d] + weights
    if need_bias:
        operands.append(jnp.stack(bias_rows))                     # one resident (L, Nmax) f32 input

    out_dtype = inputs.dtype

    # ---- VMEM budget (streamed tiles double-buffered, weights single-buffered)
    w_bytes = sum(int(w.size) * w.dtype.itemsize for w in weights)
    b_bytes = _round_up(num_layers, 8) * Nmax * 4 if need_bias else 0
    x_tile = tm * x2d.shape[1] * x2d.dtype.itemsize
    o_tile = tm * Hp * jnp.dtype(out_dtype).itemsize
    interm = tm * Nmax * 4 + tm * max(Fp, Nmax) * 2               # f32 acc + bf16 activation
    vmem_needed = 2 * x_tile + 2 * o_tile + w_bytes + b_bytes + 2 * interm + (2 << 20)
    vmem_limit = int(min(max(vmem_needed, 32 << 20), 64 << 20))

    flops = 2 * Mp * sum(finp * foutp for *_, finp, foutp in dims)
    bytes_accessed = (int(x2d.size) * x2d.dtype.itemsize + w_bytes + b_bytes
                      + Mp * Hp * jnp.dtype(out_dtype).itemsize)

    kernel = _make_prenet_kernel(num_layers, fold, [d[3] for d in dims],
                                 need_bias, compute_dtype)

    def build(single_buffer_weights):
        kw = {"pipeline_mode": pl.Buffered(1)} if single_buffer_weights else {}
        in_specs = [pl.BlockSpec((tm, x2d.shape[1]), lambda i: (i, 0))]     # streamed rows
        for w in weights:
            in_specs.append(pl.BlockSpec(w.shape, lambda i: (0, 0), **kw))  # resident W
        if need_bias:
            in_specs.append(pl.BlockSpec((num_layers, Nmax), lambda i: (0, 0), **kw))
        return pl.pallas_call(
            kernel,
            out_shape=jax.ShapeDtypeStruct((Mp, Hp), out_dtype),
            grid=grid,
            in_specs=in_specs,
            out_specs=pl.BlockSpec((tm, Hp), lambda i: (i, 0)),
            compiler_params=pltpu.CompilerParams(
                dimension_semantics=("parallel",),
                vmem_limit_bytes=vmem_limit),
            cost_estimate=pl.CostEstimate(
                flops=flops, transcendentals=0, bytes_accessed=bytes_accessed),
        )

    try:
        out = build(True)(*operands)
    except Exception:   # pipeline_mode / Buffered(1) not supported -> default buffering
        out = build(False)(*operands)

    if Mp != M or Hp != H:
        out = out[:M, :H]
    return out.reshape(B, T, H)


def init_prenet_params(key, input_size, num_layers, hidden_size, dtype=jnp.float32):
    """Deterministic params; mirrors nn.Linear shapes (stored as (in, out))."""
    in_sizes = [input_size] + [hidden_size] * (num_layers - 1)
    out_sizes = [hidden_size] * num_layers
    params = []
    for i, (fin, fout) in enumerate(zip(in_sizes, out_sizes)):
        kw, kb = jax.random.split(jax.random.fold_in(key, i))
        bound = 1.0 / (fin ** 0.5)
        w = jax.random.uniform(kw, (fin, fout), dtype, minval=-bound, maxval=bound)
        b = jax.random.uniform(kb, (fout,), dtype, minval=-bound, maxval=bound)
        params.append((w, b))
    return params


def prenet_reference(inputs, params, *, compute_dtype=jnp.bfloat16):
    """Pure-jnp reference mirroring the kernel numerics (bf16 operands, f32 accum,
    bf16 inter-layer activations, bias routed through bf16 when the kernel folds it)."""
    B, T, F = inputs.shape
    fold = _fold_flags(params)
    num_layers = len(params)
    x = inputs.reshape(B * T, F).astype(compute_dtype)
    for l, (w, b) in enumerate(params):
        b_eff = (b.astype(compute_dtype) if fold[l] else b).astype(jnp.float32)
        y = jnp.dot(x, w.astype(compute_dtype),
                    preferred_element_type=jnp.float32) + b_eff
        h = jnp.maximum(y, 0.0)
        x = h.astype(compute_dtype) if l < num_layers - 1 else h
    return x.astype(inputs.dtype).reshape(B, T, -1)


if __name__ == "__main__":
    batch, seq = 2, 8
    input_size, hidden_size, num_layers = 32, 32, 3

    key = jax.random.PRNGKey(0)
    k_in, k_p = jax.random.split(key)
    inputs = jax.random.normal(k_in, (batch, seq, input_size), dtype=jnp.float32)
    params = init_prenet_params(k_p, input_size, num_layers, hidden_size)

    out = jax.block_until_ready(prenet_forward(inputs, params))

    # sanity: shape, ReLU non-negativity, numerics vs pure-jnp reference
    assert out.shape == (batch, seq, hidden_size)
    assert bool(jnp.all(out >= 0.0))
    ref = jax.block_until_ready(prenet_reference(inputs, params))
    max_err = float(jnp.max(jnp.abs(out - ref)))
    assert max_err < 1e-3, f"max abs error {max_err}"

    print("KERNEL_OK")
</pallas_src>

<mosaic_0001>
module attributes {stable_mosaic.version = 11 : i64} {
  func.func @kernel(%arg0: i32, %arg1: memref<16x128xbf16, #tpu.memory_space<vmem>>, %arg2: memref<128x128xbf16, #tpu.memory_space<vmem>>, %arg3: memref<128x128xbf16, #tpu.memory_space<vmem>>, %arg4: memref<128x128xbf16, #tpu.memory_space<vmem>>, %arg5: memref<16x128xf32, #tpu.memory_space<vmem>>) attributes {dimension_semantics = [#tpu.dimension_semantics<parallel>], iteration_bounds = array<i64: 1>, scalar_prefetch = 0 : i64, scratch_operands = 0 : i64, tpu.core_type = #tpu.core_type<tc>, window_params = [{transform_indices = @transform_0, window_bounds = array<i64: 16, 128>}, {pipeline_mode = #tpu.pipeline_mode<synchronous>, transform_indices = @transform_1, window_bounds = array<i64: 128, 128>}, {pipeline_mode = #tpu.pipeline_mode<synchronous>, transform_indices = @transform_2, window_bounds = array<i64: 128, 128>}, {pipeline_mode = #tpu.pipeline_mode<synchronous>, transform_indices = @transform_3, window_bounds = array<i64: 128, 128>}, {transform_indices = @transform_4, window_bounds = array<i64: 16, 128>}]} {
    %c0 = arith.constant 0 : index
    %c0_0 = arith.constant 0 : index
    %0 = vector.load %arg1[%c0, %c0_0] : memref<16x128xbf16, #tpu.memory_space<vmem>>, vector<16x128xbf16>
    %c0_1 = arith.constant 0 : index
    %c0_2 = arith.constant 0 : index
    %1 = vector.load %arg2[%c0_1, %c0_2] : memref<128x128xbf16, #tpu.memory_space<vmem>>, vector<128x128xbf16>
    %cst = arith.constant dense<0.000000e+00> : vector<16x128xf32>
    %2 = tpu.matmul %0, %1, %cst {dimension_numbers = #tpu.dot_dimension_numbers<[1], [0], [0], [1], [0, 0, 1, 1], [], []>} : vector<16x128xbf16>, vector<128x128xbf16>, vector<16x128xf32> -> vector<16x128xf32>
    %cst_3 = arith.constant 0.000000e+00 : f32
    %3 = vector.broadcast %cst_3 : f32 to vector<16x128xf32>
    %4 = arith.maximumf %2, %3 : vector<16x128xf32>
    %5 = arith.truncf %4 : vector<16x128xf32> to vector<16x128xbf16>
    %c0_4 = arith.constant 0 : index
    %c0_5 = arith.constant 0 : index
    %6 = vector.load %arg3[%c0_4, %c0_5] : memref<128x128xbf16, #tpu.memory_space<vmem>>, vector<128x128xbf16>
    %cst_6 = arith.constant dense<0.000000e+00> : vector<16x128xf32>
    %7 = tpu.matmul %5, %6, %cst_6 {dimension_numbers = #tpu.dot_dimension_numbers<[1], [0], [0], [1], [0, 0, 1, 1], [], []>} : vector<16x128xbf16>, vector<128x128xbf16>, vector<16x128xf32> -> vector<16x128xf32>
    %cst_7 = arith.constant 0.000000e+00 : f32
    %8 = vector.broadcast %cst_7 : f32 to vector<16x128xf32>
    %9 = arith.maximumf %7, %8 : vector<16x128xf32>
    %10 = arith.truncf %9 : vector<16x128xf32> to vector<16x128xbf16>
    %c0_8 = arith.constant 0 : index
    %c0_9 = arith.constant 0 : index
    %11 = vector.load %arg4[%c0_8, %c0_9] : memref<128x128xbf16, #tpu.memory_space<vmem>>, vector<128x128xbf16>
    %cst_10 = arith.constant dense<0.000000e+00> : vector<16x128xf32>
    %12 = tpu.matmul %10, %11, %cst_10 {dimension_numbers = #tpu.dot_dimension_numbers<[1], [0], [0], [1], [0, 0, 1, 1], [], []>} : vector<16x128xbf16>, vector<128x128xbf16>, vector<16x128xf32> -> vector<16x128xf32>
    %cst_11 = arith.constant 0.000000e+00 : f32
    %13 = vector.broadcast %cst_11 : f32 to vector<16x128xf32>
    %14 = arith.maximumf %12, %13 : vector<16x128xf32>
    %c0_12 = arith.constant 0 : index
    %c0_13 = arith.constant 0 : index
    %15 = vector.load %arg5[%c0_12, %c0_13] : memref<16x128xf32, #tpu.memory_space<vmem>>, vector<16x128xf32>
    tpu.vector_store %arg5[%c0_12, %c0_13], %14 {strides = array<i32>} : memref<16x128xf32, #tpu.memory_space<vmem>>, vector<16x128xf32>,
    return
  }
  func.func @transform_0(%arg0: i32) -> (i32, i32) {
    %c0_i32 = arith.constant 0 : i32
    %c0_i32_0 = arith.constant 0 : i32
    return %arg0, %c0_i32 : i32, i32
  }
  func.func @transform_1(%arg0: i32) -> (i32, i32) {
    %c0_i32 = arith.constant 0 : i32
    %c0_i32_0 = arith.constant 0 : i32
    %c0_i32_1 = arith.constant 0 : i32
    return %c0_i32, %c0_i32_0 : i32, i32
  }
  func.func @transform_2(%arg0: i32) -> (i32, i32) {
    %c0_i32 = arith.constant 0 : i32
    %c0_i32_0 = arith.constant 0 : i32
    %c0_i32_1 = arith.constant 0 : i32
    return %c0_i32, %c0_i32_0 : i32, i32
  }
  func.func @transform_3(%arg0: i32) -> (i32, i32) {
    %c0_i32 = arith.constant 0 : i32
    %c0_i32_0 = arith.constant 0 : i32
    %c0_i32_1 = arith.constant 0 : i32
    return %c0_i32, %c0_i32_0 : i32, i32
  }
  func.func @transform_4(%arg0: i32) -> (i32, i32) {
    %c0_i32 = arith.constant 0 : i32
    %c0_i32_0 = arith.constant 0 : i32
    return %arg0, %c0_i32 : i32, i32
  }
}

module attributes {stable_mosaic.version = 11 : i64} {
  func.func @kernel(%arg0: i32, %arg1: memref<16x128xbf16, #tpu.memory_space<vmem>>, %arg2: memref<128x128xbf16, #tpu.memory_space<vmem>>, %arg3: memref<128x128xbf16, #tpu.memory_space<vmem>>, %arg4: memref<128x128xbf16, #tpu.memory_space<vmem>>, %arg5: memref<16x128xf32, #tpu.memory_space<vmem>>) attributes {dimension_semantics = [#tpu.dimension_semantics<parallel>], iteration_bounds = array<i64: 1>, scalar_prefetch = 0 : i64, scratch_operands = 0 : i64, tpu.core_type = #tpu.core_type<tc>, window_params = [{transform_indices = @transform_0, window_bounds = array<i64: 16, 128>}, {pipeline_mode = #tpu.pipeline_mode<synchronous>, transform_indices = @transform_1, window_bounds = array<i64: 128, 128>}, {pipeline_mode = #tpu.pipeline_mode<synchronous>, transform_indices = @transform_2, window_bounds = array<i64: 128, 128>}, {pipeline_mode = #tpu.pipeline_mode<synchronous>, transform_indices = @transform_3, window_bounds = array<i64: 128, 128>}, {transform_indices = @transform_4, window_bounds = array<i64: 16, 128>}]} {
    %c0 = arith.constant 0 : index
    %c0_0 = arith.constant 0 : index
    %0 = vector.load %arg1[%c0, %c0_0] : memref<16x128xbf16, #tpu.memory_space<vmem>>, vector<16x128xbf16>
    %c0_1 = arith.constant 0 : index
    %c0_2 = arith.constant 0 : index
    %1 = vector.load %arg2[%c0_1, %c0_2] : memref<128x128xbf16, #tpu.memory_space<vmem>>, vector<128x128xbf16>
    %cst = arith.constant dense<0.000000e+00> : vector<16x128xf32>
    %2 = tpu.matmul %0, %1, %cst {dimension_numbers = #tpu.dot_dimension_numbers<[1], [0], [0], [1], [0, 0, 1, 1], [], []>} : vector<16x128xbf16>, vector<128x128xbf16>, vector<16x128xf32> -> vector<16x128xf32>
    %cst_3 = arith.constant 0.000000e+00 : f32
    %3 = vector.broadcast %cst_3 : f32 to vector<16x128xf32>
    %4 = arith.maximumf %2, %3 : vector<16x128xf32>
    %5 = arith.truncf %4 : vector<16x128xf32> to vector<16x128xbf16>
    %c0_4 = arith.constant 0 : index
    %c0_5 = arith.constant 0 : index
    %6 = vector.load %arg3[%c0_4, %c0_5] : memref<128x128xbf16, #tpu.memory_space<vmem>>, vector<128x128xbf16>
    %cst_6 = arith.constant dense<0.000000e+00> : vector<16x128xf32>
    %7 = tpu.matmul %5, %6, %cst_6 {dimension_numbers = #tpu.dot_dimension_numbers<[1], [0], [0], [1], [0, 0, 1, 1], [], []>} : vector<16x128xbf16>, vector<128x128xbf16>, vector<16x128xf32> -> vector<16x128xf32>
    %cst_7 = arith.constant 0.000000e+00 : f32
    %8 = vector.broadcast %cst_7 : f32 to vector<16x128xf32>
    %9 = arith.maximumf %7, %8 : vector<16x128xf32>
    %10 = arith.truncf %9 : vector<16x128xf32> to vector<16x128xbf16>
    %c0_8 = arith.constant 0 : index
    %c0_9 = arith.constant 0 : index
    %11 = vector.load %arg4[%c0_8, %c0_9] : memref<128x128xbf16, #tpu.memory_space<vmem>>, vector<128x128xbf16>
    %cst_10 = arith.constant dense<0.000000e+00> : vector<16x128xf32>
    %12 = tpu.matmul %10, %11, %cst_10 {dimension_numbers = #tpu.dot_dimension_numbers<[1], [0], [0], [1], [0, 0, 1, 1], [], []>} : vector<16x128xbf16>, vector<128x128xbf16>, vector<16x128xf32> -> vector<16x128xf32>
    %cst_11 = arith.constant 0.000000e+00 : f32
    %13 = vector.broadcast %cst_11 : f32 to vector<16x128xf32>
    %14 = arith.maximumf %12, %13 : vector<16x128xf32>
    %c0_12 = arith.constant 0 : index
    %c0_13 = arith.constant 0 : index
    %15 = vector.load %arg5[%c0_12, %c0_13] : memref<16x128xf32, #tpu.memory_space<vmem>>, vector<16x128xf32>
    tpu.vector_store %arg5[%c0_12, %c0_13], %14 {strides = array<i32>} : memref<16x128xf32, #tpu.memory_space<vmem>>, vector<16x128xf32>,
    return
  }
  func.func @transform_0(%arg0: i32) -> (i32, i32) {
    %c0_i32 = arith.constant 0 : i32
    %c0_i32_0 = arith.constant 0 : i32
    return %arg0, %c0_i32 : i32, i32
  }
  func.func @transform_1(%arg0: i32) -> (i32, i32) {
    %c0_i32 = arith.constant 0 : i32
    %c0_i32_0 = arith.constant 0 : i32
    %c0_i32_1 = arith.constant 0 : i32
    return %c0_i32, %c0_i32_0 : i32, i32
  }
  func.func @transform_2(%arg0: i32) -> (i32, i32) {
    %c0_i32 = arith.constant 0 : i32
    %c0_i32_0 = arith.constant 0 : i32
    %c0_i32_1 = arith.constant 0 : i32
    return %c0_i32, %c0_i32_0 : i32, i32
  }
  func.func @transform_3(%arg0: i32) -> (i32, i32) {
    %c0_i32 = arith.constant 0 : i32
    %c0_i32_0 = arith.constant 0 : i32
    %c0_i32_1 = arith.constant 0 : i32
    return %c0_i32, %c0_i32_0 : i32, i32
  }
  func.func @transform_4(%arg0: i32) -> (i32, i32) {
    %c0_i32 = arith.constant 0 : i32
    %c0_i32_0 = arith.constant 0 : i32
    return %arg0, %c0_i32 : i32, i32
  }
}

</mosaic_0001>

<llo_original>
// kernel: tpu_custom_call.1
$region0: #{tpu_custom_call.1}
  #allocation0 [shape = 'u32[]', space=smem, size = 0x4, offset = 0x4, fixed_abs, tag = 'smem constant byte address 0x4 - core index']
  #allocation1 [shape = 'u32[144,128]{1,0:T(1,128)}', space=vmem, size = 0x12000, scoped, tag = 'internal scratch']
  %s0 = inlined_call_operand.hbm [shape: bf16[16,128], index: 0, kind: input, shape index: {}]
  %s1 = inlined_call_operand.hbm [shape: bf16[128,128], index: 1, kind: input, shape index: {}]
  %s2 = inlined_call_operand.hbm [shape: bf16[128,128], index: 2, kind: input, shape index: {}]
  %s3 = inlined_call_operand.hbm [shape: bf16[128,128], index: 3, kind: input, shape index: {}]
  %s4 = inlined_call_operand.hbm [shape: f32[16,128], index: 4, kind: output, shape index: {}]
  %s5 = sld [smem:[#allocation0]]
  $region42: #{tpu_custom_call.1} parent=0
    _
  %s7 = ssub.s32 1, %s5
  %s8 = scalar_select 0, %s7, %s5
  $region1: #{tpu_custom_call.1} parent=0
    #allocation2 [shape = 'u8[4096]{0}', space=vmem, size = 0x1000, scoped, tag = 'input window, operand 0, single buffered']
    #allocation3 [shape = 's32[1]{0}', space=sflag, size = 0x4, scoped, tag = 'scoped memory for tpu_custom_call.1']
    #allocation4 [shape = 's32[1]{0}', space=sflag, size = 0x4, scoped, tag = 'scoped memory for tpu_custom_call.1']
    #allocation5 [shape = 'u8[32768]{0}', space=vmem, size = 0x8000, scoped, tag = 'input window, operand 1, single buffered']
    #allocation6 [shape = 's32[1]{0}', space=sflag, size = 0x4, scoped, tag = 'scoped memory for tpu_custom_call.1']
    #allocation7 [shape = 'u8[32768]{0}', space=vmem, size = 0x8000, scoped, tag = 'input window, operand 2, single buffered']
    #allocation8 [shape = 'u8[32768]{0}', space=vmem, size = 0x8000, scoped, tag = 'input window, operand 3, single buffered']
    #allocation9 [shape = 's32[1]{0}', space=sflag, size = 0x4, scoped, tag = 'scoped memory for tpu_custom_call.1']
    #allocation10 [shape = 'u8[8192]{0}', space=vmem, size = 0x2000, scoped, tag = 'output window, operand 0, single buffered']
    %9 = vsyncpa [#allocation3], 0
    %10 = vsyncpa [#allocation6], 0
    %11 = vsyncpa [#allocation9], 0
    %12 = vsyncpa [#allocation4], 0
    // Predicated region
    $region2: #{tpu_custom_call.1} parent=1 // pred_check
      _
    $region3: #{tpu_custom_call.1} parent=1 // pred_check_branch
      %14 = sbr.rel (0) target = $region5
    $region4: #{tpu_custom_call.1} parent=1 // pred_region
      %s16 = ssub.s32 128, 128
      %17 = vsyncadd [#allocation3], %s16
      %s18 = sshll.u32 [#allocation2], 4
      %s19 = int_to_ptr.vmem [resolvable:$true] %s18
      %24 = dma.hbm_to_vmem [thread:$0]  %s0, 128, %s19, [#allocation3], 64, 64, 4
    $region5: #{tpu_custom_call.1} parent=1 // pred_fallthru
      _
    // Predicated region
    $region6: #{tpu_custom_call.1} parent=1 // pred_check
      _
    $region7: #{tpu_custom_call.1} parent=1 // pred_check_branch
      %26 = sbr.rel (0) target = $region9
    $region8: #{tpu_custom_call.1} parent=1 // pred_region
      %s28 = ssub.s32 1024, 1024
      %29 = vsyncadd [#allocation6], %s28
      %s30 = sshll.u32 [#allocation5], 4
      %s31 = int_to_ptr.vmem [resolvable:$true] %s30
      %36 = dma.hbm_to_vmem [thread:$0]  %s1, 1024, %s31, [#allocation6], 64, 64, 4
    $region9: #{tpu_custom_call.1} parent=1 // pred_fallthru
      _
    // Predicated region
    $region10: #{tpu_custom_call.1} parent=1 // pred_check
      _
    $region11: #{tpu_custom_call.1} parent=1 // pred_check_branch
      %38 = sbr.rel (0) target = $region13
    $region12: #{tpu_custom_call.1} parent=1 // pred_region
      %s40 = ssub.s32 1024, 1024
      %41 = vsyncadd [#allocation6], %s40
      %s42 = sshll.u32 [#allocation7], 4
      %s43 = int_to_ptr.vmem [resolvable:$true] %s42
      %48 = dma.hbm_to_vmem [thread:$0]  %s2, 1024, %s43, [#allocation6], 64, 64, 4
    $region13: #{tpu_custom_call.1} parent=1 // pred_fallthru
      _
    // Predicated region
    $region14: #{tpu_custom_call.1} parent=1 // pred_check
      _
    $region15: #{tpu_custom_call.1} parent=1 // pred_check_branch
      %50 = sbr.rel (0) target = $region17
    $region16: #{tpu_custom_call.1} parent=1 // pred_region
      %s52 = ssub.s32 1024, 1024
      %53 = vsyncadd [#allocation9], %s52
      %s54 = sshll.u32 [#allocation8], 4
      %s55 = int_to_ptr.vmem [resolvable:$true] %s54
      %60 = dma.hbm_to_vmem [thread:$0]  %s3, 1024, %s55, [#allocation9], 64, 64, 4
    $region17: #{tpu_custom_call.1} parent=1 // pred_fallthru
      _
    // Predicated region
    $region18: #{tpu_custom_call.1} parent=1 // pred_check
      _
    $region19: #{tpu_custom_call.1} parent=1 // pred_check_branch
      %62 = sbr.rel (0) target = $region21
    $region20: #{tpu_custom_call.1} parent=1 // pred_region
      %63 = dma.done [#allocation3], 128
    $region21: #{tpu_custom_call.1} parent=1 // pred_fallthru
      _
    // Predicated region
    $region22: #{tpu_custom_call.1} parent=1 // pred_check
      _
    $region23: #{tpu_custom_call.1} parent=1 // pred_check_branch
      %65 = sbr.rel (0) target = $region25
    $region24: #{tpu_custom_call.1} parent=1 // pred_region
      %66 = dma.done [#allocation6], 1024
    $region25: #{tpu_custom_call.1} parent=1 // pred_fallthru
      _
    // Predicated region
    $region26: #{tpu_custom_call.1} parent=1 // pred_check
      _
    $region27: #{tpu_custom_call.1} parent=1 // pred_check_branch
      %68 = sbr.rel (0) target = $region29
    $region28: #{tpu_custom_call.1} parent=1 // pred_region
      %69 = dma.done [#allocation6], 1024
    $region29: #{tpu_custom_call.1} parent=1 // pred_fallthru
      _
    // Predicated region
    $region30: #{tpu_custom_call.1} parent=1 // pred_check
      _
    $region31: #{tpu_custom_call.1} parent=1 // pred_check_branch
      %71 = sbr.rel (0) target = $region33
    $region32: #{tpu_custom_call.1} parent=1 // pred_region
      %72 = dma.done [#allocation9], 1024
    $region33: #{tpu_custom_call.1} parent=1 // pred_fallthru
      _
    %v74 = vld [vmem:[#allocation2] sm:$0xf]
    %v75 = vld [vmem:[#allocation2 + $0x4] sm:$0xf]
    %v76 = vld [vmem:[#allocation5] sm:$0xf]
    %v77 = vld [vmem:[#allocation5 + $0x4] sm:$0xf]
    %v78 = vld [vmem:[#allocation5 + $0x8] sm:$0xf]
    %v79 = vld [vmem:[#allocation5 + $0xc] sm:$0xf]
    %v80 = vld [vmem:[#allocation5 + $0x10] sm:$0xf]
    %v81 = vld [vmem:[#allocation5 + $0x14] sm:$0xf]
    %v82 = vld [vmem:[#allocation5 + $0x18] sm:$0xf]
    %v83 = vld [vmem:[#allocation5 + $0x1c] sm:$0xf]
    %v84 = vld [vmem:[#allocation5 + $0x20] sm:$0xf]
    %v85 = vld [vmem:[#allocation5 + $0x24] sm:$0xf]
    %v86 = vld [vmem:[#allocation5 + $0x28] sm:$0xf]
    %v87 = vld [vmem:[#allocation5 + $0x2c] sm:$0xf]
    %v88 = vld [vmem:[#allocation5 + $0x30] sm:$0xf]
    %v89 = vld [vmem:[#allocation5 + $0x34] sm:$0xf]
    %v90 = vld [vmem:[#allocation5 + $0x38] sm:$0xf]
    %v91 = vld [vmem:[#allocation5 + $0x3c] sm:$0xf]
    %v94 = vunpack.c.l.b16 %v74
    %v95 = vunpack.c.l.b16 %v75
    %v96 = vpack.c.b16 %v95, %v94
    %v114 = vunpack.c.l.b16 %v76
    %v115 = vunpack.c.l.b16 %v77
    %v116 = vunpack.c.l.b16 %v78
    %v117 = vunpack.c.l.b16 %v79
    %v118 = vunpack.c.l.b16 %v80
    %v119 = vunpack.c.l.b16 %v81
    %v120 = vunpack.c.l.b16 %v82
    %v121 = vunpack.c.l.b16 %v83
    %v122 = vunpack.c.l.b16 %v84
    %v123 = vunpack.c.l.b16 %v85
    %v124 = vunpack.c.l.b16 %v86
    %v125 = vunpack.c.l.b16 %v87
    %v126 = vunpack.c.l.b16 %v88
    %v127 = vunpack.c.l.b16 %v89
    %v128 = vunpack.c.l.b16 %v90
    %v129 = vunpack.c.l.b16 %v91
    %v130 = vpack.c.b16 %v115, %v114
    %v131 = vpack.c.b16 %v117, %v116
    %v132 = vpack.c.b16 %v119, %v118
    %v133 = vpack.c.b16 %v121, %v120
    %v134 = vpack.c.b16 %v123, %v122
    %v135 = vpack.c.b16 %v125, %v124
    %v136 = vpack.c.b16 %v127, %v126
    %v137 = vpack.c.b16 %v129, %v128
    %146 = vmatprep.subr.bf16.mxu0 0
    %147 = vmatpush1.bf16.msra.mxu0 %v137
    %148 = vmatprep.subr.bf16.mxu0 0
    %149 = vmatpush1.bf16.msra.mxu0 %v136
    %150 = vmatprep.subr.bf16.mxu0 0
    %151 = vmatpush1.bf16.msra.mxu0 %v135
    %152 = vmatprep.subr.bf16.mxu0 0
    %153 = vmatpush1.bf16.msra.mxu0 %v134
    %154 = vmatprep.subr.bf16.mxu0 0
    %155 = vmatpush1.bf16.msra.mxu0 %v133
    %156 = vmatprep.subr.bf16.mxu0 0
    %157 = vmatpush1.bf16.msra.mxu0 %v132
    %158 = vmatprep.subr.bf16.mxu0 0
    %159 = vmatpush1.bf16.msra.mxu0 %v131
    %160 = vmatprep.subr.bf16.mxu0 0
    %161 = vmatpush1.bf16.msra.mxu0 %v130
    %162 = vmatprep.subr.bf16.mxu0 0
    %163 = vmatpush2.bf16.msra.mxu0 0
    %164 = vmatprep.subr.bf16.mxu0 0
    %165 = vmatpush2.bf16.msra.mxu0 0
    %166 = vmatprep.subr.bf16.mxu0 0
    %167 = vmatpush2.bf16.msra.mxu0 0
    %168 = vmatprep.subr.bf16.mxu0 0
    %169 = vmatpush2.bf16.msra.mxu0 0
    %170 = vmatprep.subr.bf16.mxu0 0
    %171 = vmatpush2.bf16.msra.mxu0 0
    %172 = vmatprep.subr.bf16.mxu0 0
    %173 = vmatpush2.bf16.msra.mxu0 0
    %174 = vmatprep.subr.bf16.mxu0 0
    %175 = vmatpush2.bf16.msra.mxu0 0
    %176 = vmatprep.subr.bf16.mxu0 0
    %177 = vmatpush2.bf16.msra.mxu0 0
    %178 = vmatprep.mubr.bf16.mxu0 0
    %179 = vmatmul.mubr.bf16.gmra.mxu0 %v96
    %v180 = vpop.f32.mrf.mxu0
    %v181 = vadd.f32 0.0, %v180
    %v182 = vpop.f32.mrf.mxu0
    %v183 = vpop.f32.mrf.mxu0
    %v184 = vadd.f32 0.0, %v183
    %v185 = vpop.f32.mrf.mxu0
    %186 = vdwg.mxu0
    %v187 = vmax.f32 %v181, 0.0
    %v188 = vmax.f32 %v184, 0.0
    %v189 = vpack.c.bf16 %v188, %v187
    %v190 = vld [vmem:[#allocation7] sm:$0xf]
    %v191 = vld [vmem:[#allocation7 + $0x4] sm:$0xf]
    %v192 = vld [vmem:[#allocation7 + $0x8] sm:$0xf]
    %v193 = vld [vmem:[#allocation7 + $0xc] sm:$0xf]
    %v194 = vld [vmem:[#allocation7 + $0x10] sm:$0xf]
    %v195 = vld [vmem:[#allocation7 + $0x14] sm:$0xf]
    %v196 = vld [vmem:[#allocation7 + $0x18] sm:$0xf]
    %v197 = vld [vmem:[#allocation7 + $0x1c] sm:$0xf]
    %v198 = vld [vmem:[#allocation7 + $0x20] sm:$0xf]
    %v199 = vld [vmem:[#allocation7 + $0x24] sm:$0xf]
    %v200 = vld [vmem:[#allocation7 + $0x28] sm:$0xf]
    %v201 = vld [vmem:[#allocation7 + $0x2c] sm:$0xf]
    %v202 = vld [vmem:[#allocation7 + $0x30] sm:$0xf]
    %v203 = vld [vmem:[#allocation7 + $0x34] sm:$0xf]
    %v204 = vld [vmem:[#allocation7 + $0x38] sm:$0xf]
    %v205 = vld [vmem:[#allocation7 + $0x3c] sm:$0xf]
    %v222 = vunpack.c.l.b16 %v190
    %v223 = vunpack.c.l.b16 %v191
    %v224 = vunpack.c.l.b16 %v192
    %v225 = vunpack.c.l.b16 %v193
    %v226 = vunpack.c.l.b16 %v194
    %v227 = vunpack.c.l.b16 %v195
    %v228 = vunpack.c.l.b16 %v196
    %v229 = vunpack.c.l.b16 %v197
    %v230 = vunpack.c.l.b16 %v198
    %v231 = vunpack.c.l.b16 %v199
    %v232 = vunpack.c.l.b16 %v200
    %v233 = vunpack.c.l.b16 %v201
    %v234 = vunpack.c.l.b16 %v202
    %v235 = vunpack.c.l.b16 %v203
    %v236 = vunpack.c.l.b16 %v204
    %v237 = vunpack.c.l.b16 %v205
    %v238 = vpack.c.b16 %v223, %v222
    %v239 = vpack.c.b16 %v225, %v224
    %v240 = vpack.c.b16 %v227, %v226
    %v241 = vpack.c.b16 %v229, %v228
    %v242 = vpack.c.b16 %v231, %v230
    %v243 = vpack.c.b16 %v233, %v232
    %v244 = vpack.c.b16 %v235, %v234
    %v245 = vpack.c.b16 %v237, %v236
    %254 = vmatprep.subr.bf16.mxu0 0
    %255 = vmatpush1.bf16.msra.mxu0 %v245
    %256 = vmatprep.subr.bf16.mxu0 0
    %257 = vmatpush1.bf16.msra.mxu0 %v244
    %258 = vmatprep.subr.bf16.mxu0 0
    %259 = vmatpush1.bf16.msra.mxu0 %v243
    %260 = vmatprep.subr.bf16.mxu0 0
    %261 = vmatpush1.bf16.msra.mxu0 %v242
    %262 = vmatprep.subr.bf16.mxu0 0
    %263 = vmatpush1.bf16.msra.mxu0 %v241
    %264 = vmatprep.subr.bf16.mxu0 0
    %265 = vmatpush1.bf16.msra.mxu0 %v240
    %266 = vmatprep.subr.bf16.mxu0 0
    %267 = vmatpush1.bf16.msra.mxu0 %v239
    %268 = vmatprep.subr.bf16.mxu0 0
    %269 = vmatpush1.bf16.msra.mxu0 %v238
    %270 = vmatprep.subr.bf16.mxu0 0
    %271 = vmatpush2.bf16.msra.mxu0 0
    %272 = vmatprep.subr.bf16.mxu0 0
    %273 = vmatpush2.bf16.msra.mxu0 0
    %274 = vmatprep.subr.bf16.mxu0 0
    %275 = vmatpush2.bf16.msra.mxu0 0
    %276 = vmatprep.subr.bf16.mxu0 0
    %277 = vmatpush2.bf16.msra.mxu0 0
    %278 = vmatprep.subr.bf16.mxu0 0
    %279 = vmatpush2.bf16.msra.mxu0 0
    %280 = vmatprep.subr.bf16.mxu0 0
    %281 = vmatpush2.bf16.msra.mxu0 0
    %282 = vmatprep.subr.bf16.mxu0 0
    %283 = vmatpush2.bf16.msra.mxu0 0
    %284 = vmatprep.subr.bf16.mxu0 0
    %285 = vmatpush2.bf16.msra.mxu0 0
    %286 = vmatprep.mubr.bf16.mxu0 0
    %287 = vmatmul.mubr.bf16.gmra.mxu0 %v189
    %v288 = vpop.f32.mrf.mxu0
    %v289 = vadd.f32 0.0, %v288
    %v290 = vpop.f32.mrf.mxu0
    %v291 = vpop.f32.mrf.mxu0
    %v292 = vadd.f32 0.0, %v291
    %v293 = vpop.f32.mrf.mxu0
    %294 = vdwg.mxu0
    %v295 = vmax.f32 %v289, 0.0
    %v296 = vmax.f32 %v292, 0.0
    %v297 = vpack.c.bf16 %v296, %v295
    %v298 = vld [vmem:[#allocation8] sm:$0xf]
    %v299 = vld [vmem:[#allocation8 + $0x4] sm:$0xf]
    %v300 = vld [vmem:[#allocation8 + $0x8] sm:$0xf]
    %v301 = vld [vmem:[#allocation8 + $0xc] sm:$0xf]
    %v302 = vld [vmem:[#allocation8 + $0x10] sm:$0xf]
    %v303 = vld [vmem:[#allocation8 + $0x14] sm:$0xf]
    %v304 = vld [vmem:[#allocation8 + $0x18] sm:$0xf]
    %v305 = vld [vmem:[#allocation8 + $0x1c] sm:$0xf]
    %v306 = vld [vmem:[#allocation8 + $0x20] sm:$0xf]
    %v307 = vld [vmem:[#allocation8 + $0x24] sm:$0xf]
    %v308 = vld [vmem:[#allocation8 + $0x28] sm:$0xf]
    %v309 = vld [vmem:[#allocation8 + $0x2c] sm:$0xf]
    %v310 = vld [vmem:[#allocation8 + $0x30] sm:$0xf]
    %v311 = vld [vmem:[#allocation8 + $0x34] sm:$0xf]
    %v312 = vld [vmem:[#allocation8 + $0x38] sm:$0xf]
    %v313 = vld [vmem:[#allocation8 + $0x3c] sm:$0xf]
    %v330 = vunpack.c.l.b16 %v298
    %v331 = vunpack.c.l.b16 %v299
    %v332 = vunpack.c.l.b16 %v300
    %v333 = vunpack.c.l.b16 %v301
    %v334 = vunpack.c.l.b16 %v302
    %v335 = vunpack.c.l.b16 %v303
    %v336 = vunpack.c.l.b16 %v304
    %v337 = vunpack.c.l.b16 %v305
    %v338 = vunpack.c.l.b16 %v306
    %v339 = vunpack.c.l.b16 %v307
    %v340 = vunpack.c.l.b16 %v308
    %v341 = vunpack.c.l.b16 %v309
    %v342 = vunpack.c.l.b16 %v310
    %v343 = vunpack.c.l.b16 %v311
    %v344 = vunpack.c.l.b16 %v312
    %v345 = vunpack.c.l.b16 %v313
    %v346 = vpack.c.b16 %v331, %v330
    %v347 = vpack.c.b16 %v333, %v332
    %v348 = vpack.c.b16 %v335, %v334
    %v349 = vpack.c.b16 %v337, %v336
    %v350 = vpack.c.b16 %v339, %v338
    %v351 = vpack.c.b16 %v341, %v340
    %v352 = vpack.c.b16 %v343, %v342
    %v353 = vpack.c.b16 %v345, %v344
    %362 = vmatprep.subr.bf16.mxu0 0
    %363 = vmatpush1.bf16.msra.mxu0 %v353
    %364 = vmatprep.subr.bf16.mxu0 0
    %365 = vmatpush1.bf16.msra.mxu0 %v352
    %366 = vmatprep.subr.bf16.mxu0 0
    %367 = vmatpush1.bf16.msra.mxu0 %v351
    %368 = vmatprep.subr.bf16.mxu0 0
    %369 = vmatpush1.bf16.msra.mxu0 %v350
    %370 = vmatprep.subr.bf16.mxu0 0
    %371 = vmatpush1.bf16.msra.mxu0 %v349
    %372 = vmatprep.subr.bf16.mxu0 0
    %373 = vmatpush1.bf16.msra.mxu0 %v348
    %374 = vmatprep.subr.bf16.mxu0 0
    %375 = vmatpush1.bf16.msra.mxu0 %v347
    %376 = vmatprep.subr.bf16.mxu0 0
    %377 = vmatpush1.bf16.msra.mxu0 %v346
    %378 = vmatprep.subr.bf16.mxu0 0
    %379 = vmatpush2.bf16.msra.mxu0 0
    %380 = vmatprep.subr.bf16.mxu0 0
    %381 = vmatpush2.bf16.msra.mxu0 0
    %382 = vmatprep.subr.bf16.mxu0 0
    %383 = vmatpush2.bf16.msra.mxu0 0
    %384 = vmatprep.subr.bf16.mxu0 0
    %385 = vmatpush2.bf16.msra.mxu0 0
    %386 = vmatprep.subr.bf16.mxu0 0
    %387 = vmatpush2.bf16.msra.mxu0 0
    %388 = vmatprep.subr.bf16.mxu0 0
    %389 = vmatpush2.bf16.msra.mxu0 0
    %390 = vmatprep.subr.bf16.mxu0 0
    %391 = vmatpush2.bf16.msra.mxu0 0
    %392 = vmatprep.subr.bf16.mxu0 0
    %393 = vmatpush2.bf16.msra.mxu0 0
    %394 = vmatprep.mubr.bf16.mxu0 0
    %395 = vmatmul.mubr.bf16.gmra.mxu0 %v297
    %v396 = vpop.f32.mrf.mxu0
    %v397 = vadd.f32 0.0, %v396
    %v398 = vpop.f32.mrf.mxu0
    %v399 = vpop.f32.mrf.mxu0
    %v400 = vadd.f32 0.0, %v399
    %v401 = vpop.f32.mrf.mxu0
    %402 = vdwg.mxu0
    %v403 = vmax.f32 %v397, 0.0
    %v404 = vmax.f32 %v400, 0.0
    %405 = vst [vmem:[#allocation10] sm:$0xff] %v403
    %406 = vst [vmem:[#allocation10 + $0x8] sm:$0xff] %v404
    // Predicated region
    $region34: #{tpu_custom_call.1} parent=1 // pred_check
      _
    $region35: #{tpu_custom_call.1} parent=1 // pred_check_branch
      %408 = sbr.rel (0) target = $region37
    $region36: #{tpu_custom_call.1} parent=1 // pred_region
      %s410 = ssub.s32 256, 256
      %411 = vsyncadd [#allocation4], %s410
      %s412 = sshll.u32 [#allocation10], 4
      %s413 = int_to_ptr.vmem [resolvable:$true] %s412
      %418 = dma.vmem_to_hbm [thread:$0]  %s413, 256, %s4, [#allocation4], 128, 128, 8
    $region37: #{tpu_custom_call.1} parent=1 // pred_fallthru
      _
    // Predicated region
    $region38: #{tpu_custom_call.1} parent=1 // pred_check
      _
    $region39: #{tpu_custom_call.1} parent=1 // pred_check_branch
      %420 = sbr.rel (0) target = $region41
    $region40: #{tpu_custom_call.1} parent=1 // pred_region
      %421 = dma.done [#allocation4], 256
    $region41: #{tpu_custom_call.1} parent=1 // pred_fallthru
      _
    %422 = vsyncpa [#allocation3], 1
    %423 = vsyncpa [#allocation6], 1
    %424 = vsyncpa [#allocation9], 1
    %425 = vsyncpa [#allocation4], 1

// kernel: tpu_custom_call.1
$region0: #{tpu_custom_call.1}
  #allocation0 [shape = 'u32[]', space=smem, size = 0x4, offset = 0x4, fixed_abs, tag = 'smem constant byte address 0x4 - core index']
  #allocation1 [shape = 'u32[144,128]{1,0:T(1,128)}', space=vmem, size = 0x12000, scoped, tag = 'internal scratch']
  %s0 = inlined_call_operand.hbm [shape: bf16[16,128], index: 0, kind: input, shape index: {}]
  %s1 = inlined_call_operand.hbm [shape: bf16[128,128], index: 1, kind: input, shape index: {}]
  %s2 = inlined_call_operand.hbm [shape: bf16[128,128], index: 2, kind: input, shape index: {}]
  %s3 = inlined_call_operand.hbm [shape: bf16[128,128], index: 3, kind: input, shape index: {}]
  %s4 = inlined_call_operand.hbm [shape: f32[16,128], index: 4, kind: output, shape index: {}]
  %s5 = sld [smem:[#allocation0]]
  $region42: #{tpu_custom_call.1} parent=0
    _
  %s7 = ssub.s32 1, %s5
  %s8 = scalar_select 0, %s7, %s5
  $region1: #{tpu_custom_call.1} parent=0
    #allocation2 [shape = 'u8[4096]{0}', space=vmem, size = 0x1000, scoped, tag = 'input window, operand 0, single buffered']
    #allocation3 [shape = 's32[1]{0}', space=sflag, size = 0x4, scoped, tag = 'scoped memory for tpu_custom_call.1']
    #allocation4 [shape = 's32[1]{0}', space=sflag, size = 0x4, scoped, tag = 'scoped memory for tpu_custom_call.1']
    #allocation5 [shape = 'u8[32768]{0}', space=vmem, size = 0x8000, scoped, tag = 'input window, operand 1, single buffered']
    #allocation6 [shape = 's32[1]{0}', space=sflag, size = 0x4, scoped, tag = 'scoped memory for tpu_custom_call.1']
    #allocation7 [shape = 'u8[32768]{0}', space=vmem, size = 0x8000, scoped, tag = 'input window, operand 2, single buffered']
    #allocation8 [shape = 'u8[32768]{0}', space=vmem, size = 0x8000, scoped, tag = 'input window, operand 3, single buffered']
    #allocation9 [shape = 's32[1]{0}', space=sflag, size = 0x4, scoped, tag = 'scoped memory for tpu_custom_call.1']
    #allocation10 [shape = 'u8[8192]{0}', space=vmem, size = 0x2000, scoped, tag = 'output window, operand 0, single buffered']
    %9 = vsyncpa [#allocation3], 0
    %10 = vsyncpa [#allocation6], 0
    %11 = vsyncpa [#allocation9], 0
    %12 = vsyncpa [#allocation4], 0
    // Predicated region
    $region2: #{tpu_custom_call.1} parent=1 // pred_check
      _
    $region3: #{tpu_custom_call.1} parent=1 // pred_check_branch
      %14 = sbr.rel (0) target = $region5
    $region4: #{tpu_custom_call.1} parent=1 // pred_region
      %s16 = ssub.s32 128, 128
      %17 = vsyncadd [#allocation3], %s16
      %s18 = sshll.u32 [#allocation2], 4
      %s19 = int_to_ptr.vmem [resolvable:$true] %s18
      %24 = dma.hbm_to_vmem [thread:$0]  %s0, 128, %s19, [#allocation3], 64, 64, 4
    $region5: #{tpu_custom_call.1} parent=1 // pred_fallthru
      _
    // Predicated region
    $region6: #{tpu_custom_call.1} parent=1 // pred_check
      _
    $region7: #{tpu_custom_call.1} parent=1 // pred_check_branch
      %26 = sbr.rel (0) target = $region9
    $region8: #{tpu_custom_call.1} parent=1 // pred_region
      %s28 = ssub.s32 1024, 1024
      %29 = vsyncadd [#allocation6], %s28
      %s30 = sshll.u32 [#allocation5], 4
      %s31 = int_to_ptr.vmem [resolvable:$true] %s30
      %36 = dma.hbm_to_vmem [thread:$0]  %s1, 1024, %s31, [#allocation6], 64, 64, 4
    $region9: #{tpu_custom_call.1} parent=1 // pred_fallthru
      _
    // Predicated region
    $region10: #{tpu_custom_call.1} parent=1 // pred_check
      _
    $region11: #{tpu_custom_call.1} parent=1 // pred_check_branch
      %38 = sbr.rel (0) target = $region13
    $region12: #{tpu_custom_call.1} parent=1 // pred_region
      %s40 = ssub.s32 1024, 1024
      %41 = vsyncadd [#allocation6], %s40
      %s42 = sshll.u32 [#allocation7], 4
      %s43 = int_to_ptr.vmem [resolvable:$true] %s42
      %48 = dma.hbm_to_vmem [thread:$0]  %s2, 1024, %s43, [#allocation6], 64, 64, 4
    $region13: #{tpu_custom_call.1} parent=1 // pred_fallthru
      _
    // Predicated region
    $region14: #{tpu_custom_call.1} parent=1 // pred_check
      _
    $region15: #{tpu_custom_call.1} parent=1 // pred_check_branch
      %50 = sbr.rel (0) target = $region17
    $region16: #{tpu_custom_call.1} parent=1 // pred_region
      %s52 = ssub.s32 1024, 1024
      %53 = vsyncadd [#allocation9], %s52
      %s54 = sshll.u32 [#allocation8], 4
      %s55 = int_to_ptr.vmem [resolvable:$true] %s54
      %60 = dma.hbm_to_vmem [thread:$0]  %s3, 1024, %s55, [#allocation9], 64, 64, 4
    $region17: #{tpu_custom_call.1} parent=1 // pred_fallthru
      _
    // Predicated region
    $region18: #{tpu_custom_call.1} parent=1 // pred_check
      _
    $region19: #{tpu_custom_call.1} parent=1 // pred_check_branch
      %62 = sbr.rel (0) target = $region21
    $region20: #{tpu_custom_call.1} parent=1 // pred_region
      %63 = dma.done [#allocation3], 128
    $region21: #{tpu_custom_call.1} parent=1 // pred_fallthru
      _
    // Predicated region
    $region22: #{tpu_custom_call.1} parent=1 // pred_check
      _
    $region23: #{tpu_custom_call.1} parent=1 // pred_check_branch
      %65 = sbr.rel (0) target = $region25
    $region24: #{tpu_custom_call.1} parent=1 // pred_region
      %66 = dma.done [#allocation6], 1024
    $region25: #{tpu_custom_call.1} parent=1 // pred_fallthru
      _
    // Predicated region
    $region26: #{tpu_custom_call.1} parent=1 // pred_check
      _
    $region27: #{tpu_custom_call.1} parent=1 // pred_check_branch
      %68 = sbr.rel (0) target = $region29
    $region28: #{tpu_custom_call.1} parent=1 // pred_region
      %69 = dma.done [#allocation6], 1024
    $region29: #{tpu_custom_call.1} parent=1 // pred_fallthru
      _
    // Predicated region
    $region30: #{tpu_custom_call.1} parent=1 // pred_check
      _
    $region31: #{tpu_custom_call.1} parent=1 // pred_check_branch
      %71 = sbr.rel (0) target = $region33
    $region32: #{tpu_custom_call.1} parent=1 // pred_region
      %72 = dma.done [#allocation9], 1024
    $region33: #{tpu_custom_call.1} parent=1 // pred_fallthru
      _
    %v74 = vld [vmem:[#allocation2] sm:$0xf]
    %v75 = vld [vmem:[#allocation2 + $0x4] sm:$0xf]
    %v76 = vld [vmem:[#allocation5] sm:$0xf]
    %v77 = vld [vmem:[#allocation5 + $0x4] sm:$0xf]
    %v78 = vld [vmem:[#allocation5 + $0x8] sm:$0xf]
    %v79 = vld [vmem:[#allocation5 + $0xc] sm:$0xf]
    %v80 = vld [vmem:[#allocation5 + $0x10] sm:$0xf]
    %v81 = vld [vmem:[#allocation5 + $0x14] sm:$0xf]
    %v82 = vld [vmem:[#allocation5 + $0x18] sm:$0xf]
    %v83 = vld [vmem:[#allocation5 + $0x1c] sm:$0xf]
    %v84 = vld [vmem:[#allocation5 + $0x20] sm:$0xf]
    %v85 = vld [vmem:[#allocation5 + $0x24] sm:$0xf]
    %v86 = vld [vmem:[#allocation5 + $0x28] sm:$0xf]
    %v87 = vld [vmem:[#allocation5 + $0x2c] sm:$0xf]
    %v88 = vld [vmem:[#allocation5 + $0x30] sm:$0xf]
    %v89 = vld [vmem:[#allocation5 + $0x34] sm:$0xf]
    %v90 = vld [vmem:[#allocation5 + $0x38] sm:$0xf]
    %v91 = vld [vmem:[#allocation5 + $0x3c] sm:$0xf]
    %v94 = vunpack.c.l.b16 %v74
    %v95 = vunpack.c.l.b16 %v75
    %v96 = vpack.c.b16 %v95, %v94
    %v114 = vunpack.c.l.b16 %v76
    %v115 = vunpack.c.l.b16 %v77
    %v116 = vunpack.c.l.b16 %v78
    %v117 = vunpack.c.l.b16 %v79
    %v118 = vunpack.c.l.b16 %v80
    %v119 = vunpack.c.l.b16 %v81
    %v120 = vunpack.c.l.b16 %v82
    %v121 = vunpack.c.l.b16 %v83
    %v122 = vunpack.c.l.b16 %v84
    %v123 = vunpack.c.l.b16 %v85
    %v124 = vunpack.c.l.b16 %v86
    %v125 = vunpack.c.l.b16 %v87
    %v126 = vunpack.c.l.b16 %v88
    %v127 = vunpack.c.l.b16 %v89
    %v128 = vunpack.c.l.b16 %v90
    %v129 = vunpack.c.l.b16 %v91
    %v130 = vpack.c.b16 %v115, %v114
    %v131 = vpack.c.b16 %v117, %v116
    %v132 = vpack.c.b16 %v119, %v118
    %v133 = vpack.c.b16 %v121, %v120
    %v134 = vpack.c.b16 %v123, %v122
    %v135 = vpack.c.b16 %v125, %v124
    %v136 = vpack.c.b16 %v127, %v126
    %v137 = vpack.c.b16 %v129, %v128
    %146 = vmatprep.subr.bf16.mxu0 0
    %147 = vmatpush1.bf16.msra.mxu0 %v137
    %148 = vmatprep.subr.bf16.mxu0 0
    %149 = vmatpush1.bf16.msra.mxu0 %v136
    %150 = vmatprep.subr.bf16.mxu0 0
    %151 = vmatpush1.bf16.msra.mxu0 %v135
    %152 = vmatprep.subr.bf16.mxu0 0
    %153 = vmatpush1.bf16.msra.mxu0 %v134
    %154 = vmatprep.subr.bf16.mxu0 0
    %155 = vmatpush1.bf16.msra.mxu0 %v133
    %156 = vmatprep.subr.bf16.mxu0 0
    %157 = vmatpush1.bf16.msra.mxu0 %v132
    %158 = vmatprep.subr.bf16.mxu0 0
    %159 = vmatpush1.bf16.msra.mxu0 %v131
    %160 = vmatprep.subr.bf16.mxu0 0
    %161 = vmatpush1.bf16.msra.mxu0 %v130
    %162 = vmatprep.subr.bf16.mxu0 0
    %163 = vmatpush2.bf16.msra.mxu0 0
    %164 = vmatprep.subr.bf16.mxu0 0
    %165 = vmatpush2.bf16.msra.mxu0 0
    %166 = vmatprep.subr.bf16.mxu0 0
    %167 = vmatpush2.bf16.msra.mxu0 0
    %168 = vmatprep.subr.bf16.mxu0 0
    %169 = vmatpush2.bf16.msra.mxu0 0
    %170 = vmatprep.subr.bf16.mxu0 0
    %171 = vmatpush2.bf16.msra.mxu0 0
    %172 = vmatprep.subr.bf16.mxu0 0
    %173 = vmatpush2.bf16.msra.mxu0 0
    %174 = vmatprep.subr.bf16.mxu0 0
    %175 = vmatpush2.bf16.msra.mxu0 0
    %176 = vmatprep.subr.bf16.mxu0 0
    %177 = vmatpush2.bf16.msra.mxu0 0
    %178 = vmatprep.mubr.bf16.mxu0 0
    %179 = vmatmul.mubr.bf16.gmra.mxu0 %v96
    %v180 = vpop.f32.mrf.mxu0
    %v181 = vadd.f32 0.0, %v180
    %v182 = vpop.f32.mrf.mxu0
    %v183 = vpop.f32.mrf.mxu0
    %v184 = vadd.f32 0.0, %v183
    %v185 = vpop.f32.mrf.mxu0
    %186 = vdwg.mxu0
    %v187 = vmax.f32 %v181, 0.0
    %v188 = vmax.f32 %v184, 0.0
    %v189 = vpack.c.bf16 %v188, %v187
    %v190 = vld [vmem:[#allocation7] sm:$0xf]
    %v191 = vld [vmem:[#allocation7 + $0x4] sm:$0xf]
    %v192 = vld [vmem:[#allocation7 + $0x8] sm:$0xf]
    %v193 = vld [vmem:[#allocation7 + $0xc] sm:$0xf]
    %v194 = vld [vmem:[#allocation7 + $0x10] sm:$0xf]
    %v195 = vld [vmem:[#allocation7 + $0x14] sm:$0xf]
    %v196 = vld [vmem:[#allocation7 + $0x18] sm:$0xf]
    %v197 = vld [vmem:[#allocation7 + $0x1c] sm:$0xf]
    %v198 = vld [vmem:[#allocation7 + $0x20] sm:$0xf]
    %v199 = vld [vmem:[#allocation7 + $0x24] sm:$0xf]
    %v200 = vld [vmem:[#allocation7 + $0x28] sm:$0xf]
    %v201 = vld [vmem:[#allocation7 + $0x2c] sm:$0xf]
    %v202 = vld [vmem:[#allocation7 + $0x30] sm:$0xf]
    %v203 = vld [vmem:[#allocation7 + $0x34] sm:$0xf]
    %v204 = vld [vmem:[#allocation7 + $0x38] sm:$0xf]
    %v205 = vld [vmem:[#allocation7 + $0x3c] sm:$0xf]
    %v222 = vunpack.c.l.b16 %v190
    %v223 = vunpack.c.l.b16 %v191
    %v224 = vunpack.c.l.b16 %v192
    %v225 = vunpack.c.l.b16 %v193
    %v226 = vunpack.c.l.b16 %v194
    %v227 = vunpack.c.l.b16 %v195
    %v228 = vunpack.c.l.b16 %v196
    %v229 = vunpack.c.l.b16 %v197
    %v230 = vunpack.c.l.b16 %v198
    %v231 = vunpack.c.l.b16 %v199
    %v232 = vunpack.c.l.b16 %v200
    %v233 = vunpack.c.l.b16 %v201
    %v234 = vunpack.c.l.b16 %v202
    %v235 = vunpack.c.l.b16 %v203
    %v236 = vunpack.c.l.b16 %v204
    %v237 = vunpack.c.l.b16 %v205
    %v238 = vpack.c.b16 %v223, %v222
    %v239 = vpack.c.b16 %v225, %v224
    %v240 = vpack.c.b16 %v227, %v226
    %v241 = vpack.c.b16 %v229, %v228
    %v242 = vpack.c.b16 %v231, %v230
    %v243 = vpack.c.b16 %v233, %v232
    %v244 = vpack.c.b16 %v235, %v234
    %v245 = vpack.c.b16 %v237, %v236
    %254 = vmatprep.subr.bf16.mxu0 0
    %255 = vmatpush1.bf16.msra.mxu0 %v245
    %256 = vmatprep.subr.bf16.mxu0 0
    %257 = vmatpush1.bf16.msra.mxu0 %v244
    %258 = vmatprep.subr.bf16.mxu0 0
    %259 = vmatpush1.bf16.msra.mxu0 %v243
    %260 = vmatprep.subr.bf16.mxu0 0
    %261 = vmatpush1.bf16.msra.mxu0 %v242
    %262 = vmatprep.subr.bf16.mxu0 0
    %263 = vmatpush1.bf16.msra.mxu0 %v241
    %264 = vmatprep.subr.bf16.mxu0 0
    %265 = vmatpush1.bf16.msra.mxu0 %v240
    %266 = vmatprep.subr.bf16.mxu0 0
    %267 = vmatpush1.bf16.msra.mxu0 %v239
    %268 = vmatprep.subr.bf16.mxu0 0
    %269 = vmatpush1.bf16.msra.mxu0 %v238
    %270 = vmatprep.subr.bf16.mxu0 0
    %271 = vmatpush2.bf16.msra.mxu0 0
    %272 = vmatprep.subr.bf16.mxu0 0
    %273 = vmatpush2.bf16.msra.mxu0 0
    %274 = vmatprep.subr.bf16.mxu0 0
    %275 = vmatpush2.bf16.msra.mxu0 0
    %276 = vmatprep.subr.bf16.mxu0 0
    %277 = vmatpush2.bf16.msra.mxu0 0
    %278 = vmatprep.subr.bf16.mxu0 0
    %279 = vmatpush2.bf16.msra.mxu0 0
    %280 = vmatprep.subr.bf16.mxu0 0
    %281 = vmatpush2.bf16.msra.mxu0 0
    %282 = vmatprep.subr.bf16.mxu0 0
    %283 = vmatpush2.bf16.msra.mxu0 0
    %284 = vmatprep.subr.bf16.mxu0 0
    %285 = vmatpush2.bf16.msra.mxu0 0
    %286 = vmatprep.mubr.bf16.mxu0 0
    %287 = vmatmul.mubr.bf16.gmra.mxu0 %v189
    %v288 = vpop.f32.mrf.mxu0
    %v289 = vadd.f32 0.0, %v288
    %v290 = vpop.f32.mrf.mxu0
    %v291 = vpop.f32.mrf.mxu0
    %v292 = vadd.f32 0.0, %v291
    %v293 = vpop.f32.mrf.mxu0
    %294 = vdwg.mxu0
    %v295 = vmax.f32 %v289, 0.0
    %v296 = vmax.f32 %v292, 0.0
    %v297 = vpack.c.bf16 %v296, %v295
    %v298 = vld [vmem:[#allocation8] sm:$0xf]
    %v299 = vld [vmem:[#allocation8 + $0x4] sm:$0xf]
    %v300 = vld [vmem:[#allocation8 + $0x8] sm:$0xf]
    %v301 = vld [vmem:[#allocation8 + $0xc] sm:$0xf]
    %v302 = vld [vmem:[#allocation8 + $0x10] sm:$0xf]
    %v303 = vld [vmem:[#allocation8 + $0x14] sm:$0xf]
    %v304 = vld [vmem:[#allocation8 + $0x18] sm:$0xf]
    %v305 = vld [vmem:[#allocation8 + $0x1c] sm:$0xf]
    %v306 = vld [vmem:[#allocation8 + $0x20] sm:$0xf]
    %v307 = vld [vmem:[#allocation8 + $0x24] sm:$0xf]
    %v308 = vld [vmem:[#allocation8 + $0x28] sm:$0xf]
    %v309 = vld [vmem:[#allocation8 + $0x2c] sm:$0xf]
    %v310 = vld [vmem:[#allocation8 + $0x30] sm:$0xf]
    %v311 = vld [vmem:[#allocation8 + $0x34] sm:$0xf]
    %v312 = vld [vmem:[#allocation8 + $0x38] sm:$0xf]
    %v313 = vld [vmem:[#allocation8 + $0x3c] sm:$0xf]
    %v330 = vunpack.c.l.b16 %v298
    %v331 = vunpack.c.l.b16 %v299
    %v332 = vunpack.c.l.b16 %v300
    %v333 = vunpack.c.l.b16 %v301
    %v334 = vunpack.c.l.b16 %v302
    %v335 = vunpack.c.l.b16 %v303
    %v336 = vunpack.c.l.b16 %v304
    %v337 = vunpack.c.l.b16 %v305
    %v338 = vunpack.c.l.b16 %v306
    %v339 = vunpack.c.l.b16 %v307
    %v340 = vunpack.c.l.b16 %v308
    %v341 = vunpack.c.l.b16 %v309
    %v342 = vunpack.c.l.b16 %v310
    %v343 = vunpack.c.l.b16 %v311
    %v344 = vunpack.c.l.b16 %v312
    %v345 = vunpack.c.l.b16 %v313
    %v346 = vpack.c.b16 %v331, %v330
    %v347 = vpack.c.b16 %v333, %v332
    %v348 = vpack.c.b16 %v335, %v334
    %v349 = vpack.c.b16 %v337, %v336
    %v350 = vpack.c.b16 %v339, %v338
    %v351 = vpack.c.b16 %v341, %v340
    %v352 = vpack.c.b16 %v343, %v342
    %v353 = vpack.c.b16 %v345, %v344
    %362 = vmatprep.subr.bf16.mxu0 0
    %363 = vmatpush1.bf16.msra.mxu0 %v353
    %364 = vmatprep.subr.bf16.mxu0 0
    %365 = vmatpush1.bf16.msra.mxu0 %v352
    %366 = vmatprep.subr.bf16.mxu0 0
    %367 = vmatpush1.bf16.msra.mxu0 %v351
    %368 = vmatprep.subr.bf16.mxu0 0
    %369 = vmatpush1.bf16.msra.mxu0 %v350
    %370 = vmatprep.subr.bf16.mxu0 0
    %371 = vmatpush1.bf16.msra.mxu0 %v349
    %372 = vmatprep.subr.bf16.mxu0 0
    %373 = vmatpush1.bf16.msra.mxu0 %v348
    %374 = vmatprep.subr.bf16.mxu0 0
    %375 = vmatpush1.bf16.msra.mxu0 %v347
    %376 = vmatprep.subr.bf16.mxu0 0
    %377 = vmatpush1.bf16.msra.mxu0 %v346
    %378 = vmatprep.subr.bf16.mxu0 0
    %379 = vmatpush2.bf16.msra.mxu0 0
    %380 = vmatprep.subr.bf16.mxu0 0
    %381 = vmatpush2.bf16.msra.mxu0 0
    %382 = vmatprep.subr.bf16.mxu0 0
    %383 = vmatpush2.bf16.msra.mxu0 0
    %384 = vmatprep.subr.bf16.mxu0 0
    %385 = vmatpush2.bf16.msra.mxu0 0
    %386 = vmatprep.subr.bf16.mxu0 0
    %387 = vmatpush2.bf16.msra.mxu0 0
    %388 = vmatprep.subr.bf16.mxu0 0
    %389 = vmatpush2.bf16.msra.mxu0 0
    %390 = vmatprep.subr.bf16.mxu0 0
    %391 = vmatpush2.bf16.msra.mxu0 0
    %392 = vmatprep.subr.bf16.mxu0 0
    %393 = vmatpush2.bf16.msra.mxu0 0
    %394 = vmatprep.mubr.bf16.mxu0 0
    %395 = vmatmul.mubr.bf16.gmra.mxu0 %v297
    %v396 = vpop.f32.mrf.mxu0
    %v397 = vadd.f32 0.0, %v396
    %v398 = vpop.f32.mrf.mxu0
    %v399 = vpop.f32.mrf.mxu0
    %v400 = vadd.f32 0.0, %v399
    %v401 = vpop.f32.mrf.mxu0
    %402 = vdwg.mxu0
    %v403 = vmax.f32 %v397, 0.0
    %v404 = vmax.f32 %v400, 0.0
    %405 = vst [vmem:[#allocation10] sm:$0xff] %v403
    %406 = vst [vmem:[#allocation10 + $0x8] sm:$0xff] %v404
    // Predicated region
    $region34: #{tpu_custom_call.1} parent=1 // pred_check
      _
    $region35: #{tpu_custom_call.1} parent=1 // pred_check_branch
      %408 = sbr.rel (0) target = $region37
    $region36: #{tpu_custom_call.1} parent=1 // pred_region
      %s410 = ssub.s32 256, 256
      %411 = vsyncadd [#allocation4], %s410
      %s412 = sshll.u32 [#allocation10], 4
      %s413 = int_to_ptr.vmem [resolvable:$true] %s412
      %418 = dma.vmem_to_hbm [thread:$0]  %s413, 256, %s4, [#allocation4], 128, 128, 8
    $region37: #{tpu_custom_call.1} parent=1 // pred_fallthru
      _
    // Predicated region
    $region38: #{tpu_custom_call.1} parent=1 // pred_check
      _
    $region39: #{tpu_custom_call.1} parent=1 // pred_check_branch
      %420 = sbr.rel (0) target = $region41
    $region40: #{tpu_custom_call.1} parent=1 // pred_region
      %421 = dma.done [#allocation4], 256
    $region41: #{tpu_custom_call.1} parent=1 // pred_fallthru
      _
    %422 = vsyncpa [#allocation3], 1
    %423 = vsyncpa [#allocation6], 1
    %424 = vsyncpa [#allocation9], 1
    %425 = vsyncpa [#allocation4], 1

</llo_original>
